<compile_context>
chip_gen: v5e
topology: v5e:2x2
jax: 0.10.0
libtpu: 0.0.40
codegen_flags: <defaults>
</compile_context>

<pallas_src>
import jax
import jax.numpy as jnp
from jax.experimental import pallas as pl
from jax.experimental.pallas import tpu as pltpu


def _relu_kernel(x_ref, o_ref):
    # Elementwise ReLU on the current VMEM tile (single vld / vmax / vst per
    # vreg — HBM DMA bandwidth is the binding resource, so no extra work here).
    x = x_ref[...]
    o_ref[...] = jnp.maximum(x, jnp.zeros((), dtype=x.dtype))


def _relu_slab(x2, *, tile_bytes, vmem_limit_bytes, donate=False,
               tc_split_bytes=4 * 1024 * 1024):
    """ReLU on a 2D (rows, L) slab, L % 128 == 0 (or L == full extent).

    No padding: the ragged last row-block is masked by Pallas.
    """
    rows, L = x2.shape
    dtype = x2.dtype
    itemsize = jnp.dtype(dtype).itemsize
    # Sublane multiple for the dtype: 8 (f32), 16 (bf16), 32 (int8/fp8).
    sublane = max(8, 32 // itemsize)
    total_bytes = rows * L * itemsize

    if rows < sublane:
        # Tiny slab: one block with the full row extent (always a legal block dim).
        tm = rows
    else:
        # Row tile from the byte budget, a multiple of the sublane count and <= rows.
        tm_budget = max(sublane, (tile_bytes // (L * itemsize)) // sublane * sublane)
        tm = min(tm_budget, (rows // sublane) * sublane)
        # v7x has 2 TensorCores: avoid a single-block grid for inputs big
        # enough to matter so the "parallel" axis can shard across both cores.
        if pl.cdiv(rows, tm) < 2 and total_bytes >= tc_split_bytes:
            tm = max(sublane, (rows // 2) // sublane * sublane)

    grid = (pl.cdiv(rows, tm),)

    extra = {}
    if donate:
        # Mirrors nn.ReLU(inplace=True): reuse the input buffer when the
        # caller donates it (otherwise XLA would insert a defensive copy,
        # so this is opt-in).
        extra["input_output_aliases"] = {0: 0}

    return pl.pallas_call(
        _relu_kernel,
        out_shape=jax.ShapeDtypeStruct((rows, L), dtype),
        grid=grid,
        in_specs=[pl.BlockSpec((tm, L), lambda i: (i, 0))],
        out_specs=pl.BlockSpec((tm, L), lambda i: (i, 0)),
        compiler_params=pltpu.CompilerParams(
            dimension_semantics=("parallel",),
            vmem_limit_bytes=vmem_limit_bytes,
        ),
        **extra,
    )(x2)


def pallas_relu(x, *, tile_bytes=8 * 1024 * 1024,
                vmem_limit_bytes=48 * 1024 * 1024, donate=False):
    """Apply ReLU elementwise using a Pallas TPU kernel (any rank / dtype)."""
    orig_shape = x.shape
    total = x.size
    if total == 0:
        return x

    dtype = x.dtype
    zero = jnp.zeros((), dtype=dtype)
    # TODO(synk): packed sub-byte dtypes (int4/fp4) are not handled by this
    # byte-based tiling; they would need their own sublane multiple.

    flat = x.reshape(-1)  # contiguous reshape: no data movement

    # Pick the widest lane-dense width (multiple of 128) that divides `total`
    # exactly, preferring one that leaves at least a full sublane of rows.
    candidates = (4096, 2048, 1024, 512, 256, 128)
    L = 0
    for cand in candidates:
        if total % cand == 0 and total // cand >= 8:
            L = cand
            break
    if L == 0:
        for cand in candidates:
            if total % cand == 0:
                L = cand
                break

    if L:
        out2 = _relu_slab(flat.reshape(total // L, L),
                          tile_bytes=tile_bytes,
                          vmem_limit_bytes=vmem_limit_bytes,
                          donate=donate)
        return out2.reshape(orig_shape)

    # `total` is not a multiple of 128: run the kernel on the 128-aligned bulk
    # and handle the (<128-element) tail in plain jnp — never a whole-array
    # pad/slice pass.
    bulk = (total // 128) * 128
    if bulk == 0:
        return jnp.maximum(x, zero)
    out_bulk = _relu_slab(flat[:bulk].reshape(bulk // 128, 128),
                          tile_bytes=tile_bytes,
                          vmem_limit_bytes=vmem_limit_bytes).reshape(-1)
    out_tail = jnp.maximum(flat[bulk:], zero)
    return jnp.concatenate([out_bulk, out_tail]).reshape(orig_shape)


if __name__ == "__main__":
    key = jax.random.PRNGKey(0)

    # Small NCHW-like input consistent with the module's forward (elementwise).
    x = jax.random.normal(key, (2, 4, 16, 16), dtype=jnp.float32)
    y = pallas_relu(x)
    jax.block_until_ready(y)
    ref = jnp.maximum(x, 0.0)
    assert y.shape == x.shape and y.dtype == x.dtype
    assert bool(jnp.allclose(y, ref))

    # Unaligned element count (exercises the no-pad bulk + tail path).
    x2 = jax.random.normal(jax.random.PRNGKey(1), (7, 37), dtype=jnp.float32)
    y2 = pallas_relu(x2)
    jax.block_until_ready(y2)
    assert y2.shape == x2.shape and y2.dtype == x2.dtype
    assert bool(jnp.allclose(y2, jnp.maximum(x2, 0.0)))

    print("KERNEL_OK")
</pallas_src>

<mosaic_0001>
module attributes {stable_mosaic.version = 11 : i64} {
  func.func @_relu_kernel(%arg0: i32, %arg1: memref<8x256xf32, #tpu.memory_space<vmem>>, %arg2: memref<8x256xf32, #tpu.memory_space<vmem>>) attributes {dimension_semantics = [#tpu.dimension_semantics<parallel>], iteration_bounds = array<i64: 1>, scalar_prefetch = 0 : i64, scratch_operands = 0 : i64, tpu.core_type = #tpu.core_type<tc>, window_params = [{transform_indices = @transform_0, window_bounds = array<i64: 8, 256>}, {transform_indices = @transform_1, window_bounds = array<i64: 8, 256>}]} {
    %c0 = arith.constant 0 : index
    %c0_0 = arith.constant 0 : index
    %0 = vector.load %arg1[%c0, %c0_0] : memref<8x256xf32, #tpu.memory_space<vmem>>, vector<8x256xf32>
    %cst = arith.constant 0.000000e+00 : f32
    %1 = vector.broadcast %cst : f32 to vector<8x256xf32>
    %2 = arith.maximumf %0, %1 : vector<8x256xf32>
    %c0_1 = arith.constant 0 : index
    %c0_2 = arith.constant 0 : index
    %3 = vector.load %arg2[%c0_1, %c0_2] : memref<8x256xf32, #tpu.memory_space<vmem>>, vector<8x256xf32>
    tpu.vector_store %arg2[%c0_1, %c0_2], %2 {strides = array<i32>} : memref<8x256xf32, #tpu.memory_space<vmem>>, vector<8x256xf32>,
    return
  }
  func.func @transform_0(%arg0: i32) -> (i32, i32) {
    %c0_i32 = arith.constant 0 : i32
    %c0_i32_0 = arith.constant 0 : i32
    return %arg0, %c0_i32 : i32, i32
  }
  func.func @transform_1(%arg0: i32) -> (i32, i32) {
    %c0_i32 = arith.constant 0 : i32
    %c0_i32_0 = arith.constant 0 : i32
    return %arg0, %c0_i32 : i32, i32
  }
}

</mosaic_0001>

<llo_original>
// kernel: tpu_custom_call.1
$region0: #{tpu_custom_call.1}
  #allocation0 [shape = 'u32[]', space=smem, size = 0x4, offset = 0x4, fixed_abs, tag = 'smem constant byte address 0x4 - core index']
  #allocation1 [shape = 'u32[72,128]{1,0:T(1,128)}', space=vmem, size = 0x9000, scoped, tag = 'internal scratch']
  %s0 = inlined_call_operand.hbm [shape: f32[8,256], index: 0, kind: input, shape index: {}]
  %s1 = inlined_call_operand.hbm [shape: f32[8,256], index: 1, kind: output, shape index: {}]
  %s2 = sld [smem:[#allocation0]]
  $region18: #{tpu_custom_call.1} parent=0
    _
  %s4 = ssub.s32 1, %s2
  %s5 = scalar_select 0, %s4, %s2
  $region1: #{tpu_custom_call.1} parent=0
    #allocation2 [shape = 'u8[8192]{0}', space=vmem, size = 0x2000, scoped, tag = 'input window, operand 0, single buffered']
    #allocation3 [shape = 's32[1]{0}', space=sflag, size = 0x4, scoped, tag = 'scoped memory for tpu_custom_call.1']
    #allocation4 [shape = 's32[1]{0}', space=sflag, size = 0x4, scoped, tag = 'scoped memory for tpu_custom_call.1']
    #allocation5 [shape = 'u8[8192]{0}', space=vmem, size = 0x2000, scoped, tag = 'output window, operand 0, single buffered']
    %6 = vsyncpa [#allocation3], 0
    %7 = vsyncpa [#allocation4], 0
    // Predicated region
    $region2: #{tpu_custom_call.1} parent=1 // pred_check
      _
    $region3: #{tpu_custom_call.1} parent=1 // pred_check_branch
      %9 = sbr.rel (0) target = $region5
    $region4: #{tpu_custom_call.1} parent=1 // pred_region
      %11 = vsyncadd [#allocation3], 0
      %s13 = sshll.u32 %s0, 4
      %s14 = int_to_ptr.hbm [resolvable:$true] %s13
      %s15 = sshll.u32 [#allocation2], 4
      %s16 = int_to_ptr.vmem [resolvable:$true] %s15
      %18 = dma.hbm_to_vmem [thread:$0]  %s14, 256, %s16, [#allocation3]
    $region5: #{tpu_custom_call.1} parent=1 // pred_fallthru
      _
    // Predicated region
    $region6: #{tpu_custom_call.1} parent=1 // pred_check
      _
    $region7: #{tpu_custom_call.1} parent=1 // pred_check_branch
      %20 = sbr.rel (0) target = $region9
    $region8: #{tpu_custom_call.1} parent=1 // pred_region
      %22 = dma.done [#allocation3], 256
    $region9: #{tpu_custom_call.1} parent=1 // pred_fallthru
      _
    %v23 = vld [vmem:[#allocation2] sm:$0xff]
    %v24 = vld [vmem:[#allocation2 + $0x8] sm:$0xff]
    %v25 = vmax.f32 %v23, 0.0
    %v26 = vmax.f32 %v24, 0.0
    %27 = vst [vmem:[#allocation5] sm:$0xff] %v25
    %28 = vst [vmem:[#allocation5 + $0x8] sm:$0xff] %v26
    // Predicated region
    $region10: #{tpu_custom_call.1} parent=1 // pred_check
      _
    $region11: #{tpu_custom_call.1} parent=1 // pred_check_branch
      %30 = sbr.rel (0) target = $region13
    $region12: #{tpu_custom_call.1} parent=1 // pred_region
      %32 = vsyncadd [#allocation4], 0
      %s34 = sshll.u32 [#allocation5], 4
      %s35 = int_to_ptr.vmem [resolvable:$true] %s34
      %s36 = sshll.u32 %s1, 4
      %s37 = int_to_ptr.hbm [resolvable:$true] %s36
      %39 = dma.vmem_to_hbm [thread:$0]  %s35, 256, %s37, [#allocation4]
    $region13: #{tpu_custom_call.1} parent=1 // pred_fallthru
      _
    // Predicated region
    $region14: #{tpu_custom_call.1} parent=1 // pred_check
      _
    $region15: #{tpu_custom_call.1} parent=1 // pred_check_branch
      %41 = sbr.rel (0) target = $region17
    $region16: #{tpu_custom_call.1} parent=1 // pred_region
      %43 = dma.done [#allocation4], 256
    $region17: #{tpu_custom_call.1} parent=1 // pred_fallthru
      _
    %44 = vsyncpa [#allocation3], 1
    %45 = vsyncpa [#allocation4], 1

</llo_original>
